<compile_context>
chip_gen: v6e
topology: v6e:2x2x1
jax: 0.10.0
libtpu: 0.0.40
codegen_flags: <defaults>
</compile_context>

<pallas_src>
import numpy as np

import jax
import jax.numpy as jnp
from jax.experimental import pallas as pl
from jax.experimental.pallas import tpu as pltpu

LEAKY_SLOPE = 0.01     # nn.LeakyReLU() default
L2_EPS = 1e-12         # F.normalize default eps
BN_EPS = 1e-5          # BatchNorm1d default eps


def _round_up(x, m):
    return ((x + m - 1) // m) * m


def _choose_tile(N, tile):
    n128 = _round_up(N, 128)
    T = min(tile, n128)
    # v7x has 2 TensorCores; make sure the 'parallel' row axis has >= 2 tiles
    # whenever the graph is big enough to split (v5e/v6e are single-TC, no harm).
    if n128 // T < 2 and n128 >= 256:
        T = _round_up((n128 + 1) // 2, 128)
    return T


def _block_structure(A_np, T):
    """Per row-tile: indices of K-tiles whose (T, T) block of A has any nonzero entry.

    Padded entries repeat the last valid block index so consecutive grid steps keep the same
    block index and Pallas skips the redundant DMA; `counts` gates the compute via pl.when.
    """
    n = A_np.shape[0] // T
    nz = (A_np.reshape(n, T, n, T) != 0).any(axis=(1, 3))          # (n, n) block-nonzero mask
    counts = nz.sum(axis=1).astype(np.int32)                       # (n,)
    max_nnz = max(1, int(counts.max()))
    ids = np.zeros((n, max_nnz), dtype=np.int32)
    for r in range(n):
        ks = np.flatnonzero(nz[r])
        if ks.size:
            ids[r, :ks.size] = ks
            ids[r, ks.size:] = ks[-1]
    return jnp.asarray(ids), jnp.asarray(counts), max_nnz


# ---------------------------------------------------------------------------
# Phase 1: Z = L2-normalize(H) @ W_eff + b_eff         (runs once per row tile)
# ---------------------------------------------------------------------------
def project_kernel(h_ref, w_ref, b_ref, z_ref):
    h = h_ref[...].astype(jnp.float32)                             # (T, Fin_pad)
    # F.normalize: row-wise L2 with eps clamp (padded columns are zero -> no effect).
    norm = jnp.sqrt(jnp.sum(h * h, axis=1, keepdims=True))
    h = h / jnp.maximum(norm, L2_EPS)
    # Eval-mode BatchNorm1d is pre-folded into w_ref / b_ref in the wrapper.
    z = jnp.dot(h, w_ref[...], preferred_element_type=jnp.float32) + b_ref[...]
    z_ref[...] = z.astype(z_ref.dtype)


# ---------------------------------------------------------------------------
# Phase 2: out = LeakyReLU(A @ Z)   (block-sparse over A's nonzero (T, T) blocks)
# ---------------------------------------------------------------------------
def propagate_kernel(bid_ref, cnt_ref, z_ref, a_ref, o_ref):
    i = pl.program_id(0)
    j = pl.program_id(1)

    @pl.when(j == 0)
    def _init():
        o_ref[...] = jnp.zeros_like(o_ref)

    # Only the first cnt_ref[i] steps along j correspond to nonzero A blocks; the rest are
    # padding (same block index as the previous step -> no new DMA) and are skipped.
    @pl.when(j < cnt_ref[i])
    def _compute():
        o_ref[...] += jnp.dot(a_ref[...], z_ref[...],
                              preferred_element_type=jnp.float32)

    @pl.when(j == pl.num_programs(1) - 1)
    def _finalize():
        out = o_ref[...]
        o_ref[...] = jnp.where(out >= 0, out, LEAKY_SLOPE * out)    # LeakyReLU(0.01)
        # Dropout is identity at inference (training=False).


def gcn_layer(H, A_norm, W, b, gamma, beta, run_mean, run_var,
              *, tile=512, a_dtype=jnp.bfloat16, z_dtype=jnp.bfloat16):
    """Fused forward pass.  A_norm's sparsity structure is preprocessed host-side (it is fixed
    at module __init__ time in the reference), so this wrapper is not meant to be jitted as a
    whole -- only the two pallas_calls are the hot path."""
    N, Fin = H.shape
    Fout = W.shape[0]

    # ---- fold eval-mode BatchNorm1d into the Linear (inference-time constants) -------------
    s = gamma / jnp.sqrt(run_var + BN_EPS)                          # (Fin,)
    W_eff = (W * s[None, :]).T                                      # (Fin, Fout) = diag(s) @ W.T
    b_eff = b + (beta - run_mean * s) @ W.T                         # (Fout,)

    # ---- padding: Fin / Fout -> lane-dense 128 multiples, N -> multiple of the row tile ----
    Fin_pad = _round_up(Fin, 128)
    Fout_pad = _round_up(Fout, 128)
    T = _choose_tile(N, tile)
    N_pad = _round_up(N, T)
    n_row_tiles = N_pad // T

    H_pad = jnp.zeros((N_pad, Fin_pad), jnp.float32).at[:N, :Fin].set(H.astype(jnp.float32))
    W_pad = jnp.zeros((Fin_pad, Fout_pad), jnp.float32).at[:Fin, :Fout].set(W_eff)
    b_pad = jnp.zeros((1, Fout_pad), jnp.float32).at[0, :Fout].set(b_eff)

    # ---- block-sparse structure of A (init-time, numpy) + bf16 cast -------------------------
    # TODO(synk): this materializes a dense (N_pad, N_pad) A host-side; a CSR/ELL input format
    #             would remove the O(N^2) ceiling for very large graphs.
    A_np = np.zeros((N_pad, N_pad), dtype=np.float32)
    A_np[:N, :N] = np.asarray(jax.device_get(A_norm), dtype=np.float32)
    block_ids, block_cnt, max_blocks = _block_structure(A_np, T)
    A_pad = jnp.asarray(A_np).astype(a_dtype)                       # bf16 halves A's HBM bytes

    # ---- phase 1: projection (Z in bf16, lane-dense Fout_pad) ------------------------------
    Z_pad = pl.pallas_call(
        project_kernel,
        out_shape=jax.ShapeDtypeStruct((N_pad, Fout_pad), z_dtype),
        grid_spec=pl.GridSpec(
            grid=(n_row_tiles,),
            in_specs=[
                pl.BlockSpec((T, Fin_pad),        lambda i: (i, 0)),   # H row tile
                pl.BlockSpec((Fin_pad, Fout_pad), lambda i: (0, 0)),   # W_eff (resident)
                pl.BlockSpec((1, Fout_pad),       lambda i: (0, 0)),   # b_eff (resident)
            ],
            out_specs=pl.BlockSpec((T, Fout_pad), lambda i: (i, 0)),
        ),
        compiler_params=pltpu.CompilerParams(
            dimension_semantics=("parallel",),
        ),
    )(H_pad, W_pad, b_pad)

    # ---- phase 2: block-sparse propagation + LeakyReLU --------------------------------------
    # Right-size the VMEM limit from the actual per-step footprint (double-buffered inputs
    # + the resident f32 output tile), leaving fusion headroom for the surrounding program.
    per_step = (2 * T * T * jnp.dtype(a_dtype).itemsize            # A block, 2 buffers
                + 2 * T * Fout_pad * jnp.dtype(z_dtype).itemsize   # Z tile, 2 buffers
                + T * Fout_pad * 4)                                # resident f32 output tile
    vmem_limit = int(max(16 * 1024 * 1024, 2 * per_step))

    out = pl.pallas_call(
        propagate_kernel,
        out_shape=jax.ShapeDtypeStruct((N_pad, Fout_pad), jnp.float32),
        grid_spec=pltpu.PrefetchScalarGridSpec(
            num_scalar_prefetch=2,
            grid=(n_row_tiles, max_blocks),
            in_specs=[
                pl.BlockSpec((T, Fout_pad), lambda i, j, bid, cnt: (bid[i, j], 0)),  # Z k-tile
                pl.BlockSpec((T, T),        lambda i, j, bid, cnt: (i, bid[i, j])),  # A block
            ],
            out_specs=pl.BlockSpec((T, Fout_pad), lambda i, j, bid, cnt: (i, 0)),
        ),
        compiler_params=pltpu.CompilerParams(
            dimension_semantics=("parallel", "arbitrary"),
            vmem_limit_bytes=vmem_limit,
        ),
    )(block_ids, block_cnt, Z_pad, A_pad)

    return out[:N, :Fout]


def normalize_adjacency(A):
    """noramlize(A + I) from the reference: symmetric D^-1/2 (A+I) D^-1/2."""
    N = A.shape[0]
    A = A + jnp.eye(N, dtype=A.dtype)
    D = A.sum(axis=1)
    D_hat = jnp.diag(jnp.power(D, -0.5))
    return D_hat @ A @ D_hat


def reference_forward(H, A_norm, W, b, gamma, beta, run_mean, run_var):
    h = H / jnp.maximum(jnp.linalg.norm(H, axis=1, keepdims=True), L2_EPS)
    h = (h - run_mean) / jnp.sqrt(run_var + BN_EPS) * gamma + beta
    z = h @ W.T + b
    out = A_norm @ z
    return jnp.where(out >= 0, out, LEAKY_SLOPE * out)


if __name__ == "__main__":
    N, Fin, Fout = 64, 32, 16

    key = jax.random.PRNGKey(0)
    k_h, k_a, k_w, k_b, k_g, k_be, k_m, k_v = jax.random.split(key, 8)

    # Node features.
    H = jax.random.normal(k_h, (N, Fin), dtype=jnp.float32)

    # Deterministic symmetric binary adjacency, then normalized as in __init__.
    A_rand = jax.random.uniform(k_a, (N, N)) < 0.1
    A = jnp.logical_or(A_rand, A_rand.T).astype(jnp.float32)
    A = A * (1.0 - jnp.eye(N, dtype=jnp.float32))
    A_norm = normalize_adjacency(A)

    # Linear(input_dim, output_dim): weight (Fout, Fin), bias (Fout,)
    W = jax.random.normal(k_w, (Fout, Fin), dtype=jnp.float32) * 0.1
    b = jax.random.normal(k_b, (Fout,), dtype=jnp.float32) * 0.1

    # BatchNorm1d(input_dim) parameters / running stats (deterministic, non-trivial).
    gamma = 1.0 + 0.1 * jax.random.normal(k_g, (Fin,), dtype=jnp.float32)
    beta = 0.1 * jax.random.normal(k_be, (Fin,), dtype=jnp.float32)
    run_mean = 0.1 * jax.random.normal(k_m, (Fin,), dtype=jnp.float32)
    run_var = 1.0 + 0.1 * jax.random.uniform(k_v, (Fin,), dtype=jnp.float32)

    out = gcn_layer(H, A_norm, W, b, gamma, beta, run_mean, run_var)
    out = jax.block_until_ready(out)

    ref = reference_forward(H, A_norm, W, b, gamma, beta, run_mean, run_var)
    assert out.shape == (N, Fout)
    # bf16 A / Z in the propagation matmul (f32 accumulation) -> compare at bf16-level tolerance.
    assert jnp.allclose(out, ref, atol=5e-3, rtol=2e-2), "Pallas output mismatch vs reference"

    print("KERNEL_OK")
</pallas_src>

<mosaic_0001>
module attributes {stable_mosaic.version = 11 : i64} {
  func.func @project_kernel(%arg0: i32, %arg1: memref<128x128xf32, #tpu.memory_space<vmem>>, %arg2: memref<128x128xf32, #tpu.memory_space<vmem>>, %arg3: memref<1x128xf32, #tpu.memory_space<vmem>>, %arg4: memref<128x128xbf16, #tpu.memory_space<vmem>>) attributes {dimension_semantics = [#tpu.dimension_semantics<parallel>], iteration_bounds = array<i64: 1>, scalar_prefetch = 0 : i64, scratch_operands = 0 : i64, tpu.core_type = #tpu.core_type<tc>, window_params = [{transform_indices = @transform_0, window_bounds = array<i64: 128, 128>}, {pipeline_mode = #tpu.pipeline_mode<synchronous>, transform_indices = @transform_1, window_bounds = array<i64: 128, 128>}, {pipeline_mode = #tpu.pipeline_mode<synchronous>, transform_indices = @transform_2, window_bounds = array<i64: 1, 128>}, {transform_indices = @transform_3, window_bounds = array<i64: 128, 128>}]} {
    %c0 = arith.constant 0 : index
    %c0_0 = arith.constant 0 : index
    %0 = vector.load %arg1[%c0, %c0_0] : memref<128x128xf32, #tpu.memory_space<vmem>>, vector<128x128xf32>
    %1 = arith.mulf %0, %0 : vector<128x128xf32>
    %cst = arith.constant dense<0.000000e+00> : vector<128xf32>
    %2 = vector.multi_reduction <add>, %1, %cst [1] : vector<128x128xf32> to vector<128xf32>
    %3 = vector.shape_cast %2 : vector<128xf32> to vector<128x1xf32>
    %4 = math.sqrt %3 : vector<128x1xf32>
    %cst_1 = arith.constant 9.99999996E-13 : f32
    %5 = vector.broadcast %cst_1 : f32 to vector<128x1xf32>
    %6 = arith.maximumf %4, %5 : vector<128x1xf32>
    %7 = vector.broadcast %6 : vector<128x1xf32> to vector<128x128xf32>
    %8 = arith.divf %0, %7 : vector<128x128xf32>
    %c0_2 = arith.constant 0 : index
    %c0_3 = arith.constant 0 : index
    %9 = vector.load %arg2[%c0_2, %c0_3] : memref<128x128xf32, #tpu.memory_space<vmem>>, vector<128x128xf32>
    %cst_4 = arith.constant dense<0.000000e+00> : vector<128x128xf32>
    %10 = tpu.matmul %8, %9, %cst_4 {dimension_numbers = #tpu.dot_dimension_numbers<[1], [0], [0], [1], [0, 0, 1, 1], [], []>} : vector<128x128xf32>, vector<128x128xf32>, vector<128x128xf32> -> vector<128x128xf32>
    %c0_5 = arith.constant 0 : index
    %c0_6 = arith.constant 0 : index
    %11 = vector.load %arg3[%c0_5, %c0_6] : memref<1x128xf32, #tpu.memory_space<vmem>>, vector<1x128xf32>
    %12 = vector.broadcast %11 : vector<1x128xf32> to vector<128x128xf32>
    %13 = arith.addf %10, %12 : vector<128x128xf32>
    %14 = arith.truncf %13 : vector<128x128xf32> to vector<128x128xbf16>
    %c0_7 = arith.constant 0 : index
    %c0_8 = arith.constant 0 : index
    %15 = vector.load %arg4[%c0_7, %c0_8] : memref<128x128xbf16, #tpu.memory_space<vmem>>, vector<128x128xbf16>
    tpu.vector_store %arg4[%c0_7, %c0_8], %14 {strides = array<i32>} : memref<128x128xbf16, #tpu.memory_space<vmem>>, vector<128x128xbf16>,
    return
  }
  func.func @transform_0(%arg0: i32) -> (i32, i32) {
    %c0_i32 = arith.constant 0 : i32
    %c0_i32_0 = arith.constant 0 : i32
    return %arg0, %c0_i32 : i32, i32
  }
  func.func @transform_1(%arg0: i32) -> (i32, i32) {
    %c0_i32 = arith.constant 0 : i32
    %c0_i32_0 = arith.constant 0 : i32
    %c0_i32_1 = arith.constant 0 : i32
    return %c0_i32, %c0_i32_0 : i32, i32
  }
  func.func @transform_2(%arg0: i32) -> (i32, i32) {
    %c0_i32 = arith.constant 0 : i32
    %c0_i32_0 = arith.constant 0 : i32
    %c0_i32_1 = arith.constant 0 : i32
    return %c0_i32, %c0_i32_0 : i32, i32
  }
  func.func @transform_3(%arg0: i32) -> (i32, i32) {
    %c0_i32 = arith.constant 0 : i32
    %c0_i32_0 = arith.constant 0 : i32
    return %arg0, %c0_i32 : i32, i32
  }
}

</mosaic_0001>

<llo_original>
// kernel: tpu_custom_call.1
$region0: #{tpu_custom_call.1}
  #allocation0 [shape = 'u32[]', space=smem, size = 0x4, offset = 0x4, fixed_abs, tag = 'smem constant byte address 0x4 - core index']
  #allocation1 [shape = 'u32[144,128]{1,0:T(1,128)}', space=vmem, size = 0x12000, scoped, tag = 'internal scratch']
  %s0 = inlined_call_operand.hbm [shape: f32[128,128], index: 0, kind: input, shape index: {}]
  %s1 = inlined_call_operand.hbm [shape: f32[128,128], index: 1, kind: input, shape index: {}]
  %s2 = inlined_call_operand.vmem [shape: f32[1,128], index: 2, kind: input, shape index: {}]
  %s3 = inlined_call_operand.hbm [shape: bf16[128,128], index: 3, kind: output, shape index: {}]
  %s4 = sld [smem:[#allocation0]]
  $region30: #{tpu_custom_call.1} parent=0
    _
  %s6 = ssub.s32 1, %s4
  %s7 = scalar_select 0, %s6, %s4
  $region1: #{tpu_custom_call.1} parent=0
    #allocation2 [shape = 'u8[65536]{0}', space=vmem, size = 0x10000, scoped, tag = 'input window, operand 0, single buffered']
    #allocation3 [shape = 's32[1]{0}', space=sflag, size = 0x4, scoped, tag = 'scoped memory for tpu_custom_call.1']
    #allocation4 [shape = 's32[1]{0}', space=sflag, size = 0x4, scoped, tag = 'scoped memory for tpu_custom_call.1']
    #allocation5 [shape = 'u8[65536]{0}', space=vmem, size = 0x10000, scoped, tag = 'input window, operand 1, single buffered']
    #allocation6 [shape = 's32[1]{0}', space=sflag, size = 0x4, scoped, tag = 'scoped memory for tpu_custom_call.1']
    #allocation7 [shape = 'u8[32768]{0}', space=vmem, size = 0x8000, scoped, tag = 'output window, operand 0, single buffered']
    %8 = vsyncpa [#allocation3], 0
    %9 = vsyncpa [#allocation6], 0
    %10 = vsyncpa [#allocation4], 0
    // Predicated region
    $region2: #{tpu_custom_call.1} parent=1 // pred_check
      _
    $region3: #{tpu_custom_call.1} parent=1 // pred_check_branch
      %12 = sbr.rel (0) target = $region5
    $region4: #{tpu_custom_call.1} parent=1 // pred_region
      %s14 = ssub.s32 2048, 2048
      %15 = vsyncadd [#allocation3], %s14
      %s16 = sshll.u32 [#allocation2], 4
      %s17 = int_to_ptr.vmem [resolvable:$true] %s16
      %22 = dma.hbm_to_vmem [thread:$0]  %s0, 2048, %s17, [#allocation3], 128, 128, 8
    $region5: #{tpu_custom_call.1} parent=1 // pred_fallthru
      _
    // Predicated region
    $region6: #{tpu_custom_call.1} parent=1 // pred_check
      _
    $region7: #{tpu_custom_call.1} parent=1 // pred_check_branch
      %24 = sbr.rel (0) target = $region9
    $region8: #{tpu_custom_call.1} parent=1 // pred_region
      %s26 = ssub.s32 2048, 2048
      %27 = vsyncadd [#allocation6], %s26
      %s28 = sshll.u32 [#allocation5], 4
      %s29 = int_to_ptr.vmem [resolvable:$true] %s28
      %34 = dma.hbm_to_vmem [thread:$0]  %s1, 2048, %s29, [#allocation6], 128, 128, 8
    $region9: #{tpu_custom_call.1} parent=1 // pred_fallthru
      _
    // Predicated region
    $region10: #{tpu_custom_call.1} parent=1 // pred_check
      _
    $region11: #{tpu_custom_call.1} parent=1 // pred_check_branch
      %36 = sbr.rel (0) target = $region13
    $region12: #{tpu_custom_call.1} parent=1 // pred_region
      _
    $region13: #{tpu_custom_call.1} parent=1 // pred_fallthru
      _
    // Predicated region
    $region14: #{tpu_custom_call.1} parent=1 // pred_check
      _
    $region15: #{tpu_custom_call.1} parent=1 // pred_check_branch
      %38 = sbr.rel (0) target = $region17
    $region16: #{tpu_custom_call.1} parent=1 // pred_region
      %39 = dma.done [#allocation3], 2048
    $region17: #{tpu_custom_call.1} parent=1 // pred_fallthru
      _
    // Predicated region
    $region18: #{tpu_custom_call.1} parent=1 // pred_check
      _
    $region19: #{tpu_custom_call.1} parent=1 // pred_check_branch
      %41 = sbr.rel (0) target = $region21
    $region20: #{tpu_custom_call.1} parent=1 // pred_region
      %42 = dma.done [#allocation6], 2048
    $region21: #{tpu_custom_call.1} parent=1 // pred_fallthru
      _
    %v43 = vld [vmem:[#allocation2] sm:$0xff]
    %v44 = vld [vmem:[#allocation2 + $0x8] sm:$0xff]
    %v45 = vld [vmem:[#allocation2 + $0x10] sm:$0xff]
    %v46 = vld [vmem:[#allocation2 + $0x18] sm:$0xff]
    %v47 = vld [vmem:[#allocation2 + $0x20] sm:$0xff]
    %v48 = vld [vmem:[#allocation2 + $0x28] sm:$0xff]
    %v49 = vld [vmem:[#allocation2 + $0x30] sm:$0xff]
    %v50 = vld [vmem:[#allocation2 + $0x38] sm:$0xff]
    %v51 = vld [vmem:[#allocation2 + $0x40] sm:$0xff]
    %v52 = vld [vmem:[#allocation2 + $0x48] sm:$0xff]
    %v53 = vld [vmem:[#allocation2 + $0x50] sm:$0xff]
    %v54 = vld [vmem:[#allocation2 + $0x58] sm:$0xff]
    %v55 = vld [vmem:[#allocation2 + $0x60] sm:$0xff]
    %v56 = vld [vmem:[#allocation2 + $0x68] sm:$0xff]
    %v57 = vld [vmem:[#allocation2 + $0x70] sm:$0xff]
    %v58 = vld [vmem:[#allocation2 + $0x78] sm:$0xff]
    %v59 = vmul.f32 %v43, %v43
    %v60 = vmul.f32 %v44, %v44
    %v61 = vmul.f32 %v45, %v45
    %v62 = vmul.f32 %v46, %v46
    %v63 = vmul.f32 %v47, %v47
    %v64 = vmul.f32 %v48, %v48
    %v65 = vmul.f32 %v49, %v49
    %v66 = vmul.f32 %v50, %v50
    %v67 = vmul.f32 %v51, %v51
    %v68 = vmul.f32 %v52, %v52
    %v69 = vmul.f32 %v53, %v53
    %v70 = vmul.f32 %v54, %v54
    %v71 = vmul.f32 %v55, %v55
    %v72 = vmul.f32 %v56, %v56
    %v73 = vmul.f32 %v57, %v57
    %v74 = vmul.f32 %v58, %v58
    %75 = vadd.xlane.f32.xlu0 %v59
    %v76 = vpop.xlane.xlu0 %75
    %77 = vadd.xlane.f32.xlu0 %v60
    %v78 = vpop.xlane.xlu0 %77
    %79 = vadd.xlane.f32.xlu0 %v61
    %v80 = vpop.xlane.xlu0 %79
    %81 = vadd.xlane.f32.xlu0 %v62
    %v82 = vpop.xlane.xlu0 %81
    %83 = vadd.xlane.f32.xlu0 %v63
    %v84 = vpop.xlane.xlu0 %83
    %85 = vadd.xlane.f32.xlu0 %v64
    %v86 = vpop.xlane.xlu0 %85
    %87 = vadd.xlane.f32.xlu0 %v65
    %v88 = vpop.xlane.xlu0 %87
    %89 = vadd.xlane.f32.xlu0 %v66
    %v90 = vpop.xlane.xlu0 %89
    %91 = vadd.xlane.f32.xlu0 %v67
    %v92 = vpop.xlane.xlu0 %91
    %93 = vadd.xlane.f32.xlu0 %v68
    %v94 = vpop.xlane.xlu0 %93
    %95 = vadd.xlane.f32.xlu0 %v69
    %v96 = vpop.xlane.xlu0 %95
    %97 = vadd.xlane.f32.xlu0 %v70
    %v98 = vpop.xlane.xlu0 %97
    %99 = vadd.xlane.f32.xlu0 %v71
    %v100 = vpop.xlane.xlu0 %99
    %101 = vadd.xlane.f32.xlu0 %v72
    %v102 = vpop.xlane.xlu0 %101
    %103 = vadd.xlane.f32.xlu0 %v73
    %v104 = vpop.xlane.xlu0 %103
    %105 = vadd.xlane.f32.xlu0 %v74
    %v106 = vpop.xlane.xlu0 %105
    %v107 = vrsqrt.pop %v76
    %v108 = vmul.f32 %v76, %v107
    %vm109 = vcmp.eq.f32.partialorder %v76, inf
    %v110 = vsel %vm109, %v76, %v108
    %vm111 = vcmp.eq.f32.partialorder %v76, 0.0
    %v112 = vand.u32 %v76, 2147483648
    %v113 = vsel %vm111, %v112, %v110
    %v114 = vrsqrt.pop %v78
    %v115 = vmul.f32 %v78, %v114
    %vm116 = vcmp.eq.f32.partialorder %v78, inf
    %v117 = vsel %vm116, %v78, %v115
    %vm118 = vcmp.eq.f32.partialorder %v78, 0.0
    %v119 = vand.u32 %v78, 2147483648
    %v120 = vsel %vm118, %v119, %v117
    %v121 = vrsqrt.pop %v80
    %v122 = vmul.f32 %v80, %v121
    %vm123 = vcmp.eq.f32.partialorder %v80, inf
    %v124 = vsel %vm123, %v80, %v122
    %vm125 = vcmp.eq.f32.partialorder %v80, 0.0
    %v126 = vand.u32 %v80, 2147483648
    %v127 = vsel %vm125, %v126, %v124
    %v128 = vrsqrt.pop %v82
    %v129 = vmul.f32 %v82, %v128
    %vm130 = vcmp.eq.f32.partialorder %v82, inf
    %v131 = vsel %vm130, %v82, %v129
    %vm132 = vcmp.eq.f32.partialorder %v82, 0.0
    %v133 = vand.u32 %v82, 2147483648
    %v134 = vsel %vm132, %v133, %v131
    %v135 = vrsqrt.pop %v84
    %v136 = vmul.f32 %v84, %v135
    %vm137 = vcmp.eq.f32.partialorder %v84, inf
    %v138 = vsel %vm137, %v84, %v136
    %vm139 = vcmp.eq.f32.partialorder %v84, 0.0
    %v140 = vand.u32 %v84, 2147483648
    %v141 = vsel %vm139, %v140, %v138
    %v142 = vrsqrt.pop %v86
    %v143 = vmul.f32 %v86, %v142
    %vm144 = vcmp.eq.f32.partialorder %v86, inf
    %v145 = vsel %vm144, %v86, %v143
    %vm146 = vcmp.eq.f32.partialorder %v86, 0.0
    %v147 = vand.u32 %v86, 2147483648
    %v148 = vsel %vm146, %v147, %v145
    %v149 = vrsqrt.pop %v88
    %v150 = vmul.f32 %v88, %v149
    %vm151 = vcmp.eq.f32.partialorder %v88, inf
    %v152 = vsel %vm151, %v88, %v150
    %vm153 = vcmp.eq.f32.partialorder %v88, 0.0
    %v154 = vand.u32 %v88, 2147483648
    %v155 = vsel %vm153, %v154, %v152
    %v156 = vrsqrt.pop %v90
    %v157 = vmul.f32 %v90, %v156
    %vm158 = vcmp.eq.f32.partialorder %v90, inf
    %v159 = vsel %vm158, %v90, %v157
    %vm160 = vcmp.eq.f32.partialorder %v90, 0.0
    %v161 = vand.u32 %v90, 2147483648
    %v162 = vsel %vm160, %v161, %v159
    %v163 = vrsqrt.pop %v92
    %v164 = vmul.f32 %v92, %v163
    %vm165 = vcmp.eq.f32.partialorder %v92, inf
    %v166 = vsel %vm165, %v92, %v164
    %vm167 = vcmp.eq.f32.partialorder %v92, 0.0
    %v168 = vand.u32 %v92, 2147483648
    %v169 = vsel %vm167, %v168, %v166
    %v170 = vrsqrt.pop %v94
    %v171 = vmul.f32 %v94, %v170
    %vm172 = vcmp.eq.f32.partialorder %v94, inf
    %v173 = vsel %vm172, %v94, %v171
    %vm174 = vcmp.eq.f32.partialorder %v94, 0.0
    %v175 = vand.u32 %v94, 2147483648
    %v176 = vsel %vm174, %v175, %v173
    %v177 = vrsqrt.pop %v96
    %v178 = vmul.f32 %v96, %v177
    %vm179 = vcmp.eq.f32.partialorder %v96, inf
    %v180 = vsel %vm179, %v96, %v178
    %vm181 = vcmp.eq.f32.partialorder %v96, 0.0
    %v182 = vand.u32 %v96, 2147483648
    %v183 = vsel %vm181, %v182, %v180
    %v184 = vrsqrt.pop %v98
    %v185 = vmul.f32 %v98, %v184
    %vm186 = vcmp.eq.f32.partialorder %v98, inf
    %v187 = vsel %vm186, %v98, %v185
    %vm188 = vcmp.eq.f32.partialorder %v98, 0.0
    %v189 = vand.u32 %v98, 2147483648
    %v190 = vsel %vm188, %v189, %v187
    %v191 = vrsqrt.pop %v100
    %v192 = vmul.f32 %v100, %v191
    %vm193 = vcmp.eq.f32.partialorder %v100, inf
    %v194 = vsel %vm193, %v100, %v192
    %vm195 = vcmp.eq.f32.partialorder %v100, 0.0
    %v196 = vand.u32 %v100, 2147483648
    %v197 = vsel %vm195, %v196, %v194
    %v198 = vrsqrt.pop %v102
    %v199 = vmul.f32 %v102, %v198
    %vm200 = vcmp.eq.f32.partialorder %v102, inf
    %v201 = vsel %vm200, %v102, %v199
    %vm202 = vcmp.eq.f32.partialorder %v102, 0.0
    %v203 = vand.u32 %v102, 2147483648
    %v204 = vsel %vm202, %v203, %v201
    %v205 = vrsqrt.pop %v104
    %v206 = vmul.f32 %v104, %v205
    %vm207 = vcmp.eq.f32.partialorder %v104, inf
    %v208 = vsel %vm207, %v104, %v206
    %vm209 = vcmp.eq.f32.partialorder %v104, 0.0
    %v210 = vand.u32 %v104, 2147483648
    %v211 = vsel %vm209, %v210, %v208
    %v212 = vrsqrt.pop %v106
    %v213 = vmul.f32 %v106, %v212
    %vm214 = vcmp.eq.f32.partialorder %v106, inf
    %v215 = vsel %vm214, %v106, %v213
    %vm216 = vcmp.eq.f32.partialorder %v106, 0.0
    %v217 = vand.u32 %v106, 2147483648
    %v218 = vsel %vm216, %v217, %v215
    %v219 = vmax.f32 %v113, 1e-12
    %v220 = vmax.f32 %v120, 1e-12
    %v221 = vmax.f32 %v127, 1e-12
    %v222 = vmax.f32 %v134, 1e-12
    %v223 = vmax.f32 %v141, 1e-12
    %v224 = vmax.f32 %v148, 1e-12
    %v225 = vmax.f32 %v155, 1e-12
    %v226 = vmax.f32 %v162, 1e-12
    %v227 = vmax.f32 %v169, 1e-12
    %v228 = vmax.f32 %v176, 1e-12
    %v229 = vmax.f32 %v183, 1e-12
    %v230 = vmax.f32 %v190, 1e-12
    %v231 = vmax.f32 %v197, 1e-12
    %v232 = vmax.f32 %v204, 1e-12
    %v233 = vmax.f32 %v211, 1e-12
    %v234 = vmax.f32 %v218, 1e-12
    %v235 = vrcp.pop %v219
    %v236 = vmul.f32 %v43, %v235
    %v237 = vrcp.pop %v220
    %v238 = vmul.f32 %v44, %v237
    %v239 = vrcp.pop %v221
    %v240 = vmul.f32 %v45, %v239
    %v241 = vrcp.pop %v222
    %v242 = vmul.f32 %v46, %v241
    %v243 = vrcp.pop %v223
    %v244 = vmul.f32 %v47, %v243
    %v245 = vrcp.pop %v224
    %v246 = vmul.f32 %v48, %v245
    %v247 = vrcp.pop %v225
    %v248 = vmul.f32 %v49, %v247
    %v249 = vrcp.pop %v226
    %v250 = vmul.f32 %v50, %v249
    %v251 = vrcp.pop %v227
    %v252 = vmul.f32 %v51, %v251
    %v253 = vrcp.pop %v228
    %v254 = vmul.f32 %v52, %v253
    %v255 = vrcp.pop %v229
    %v256 = vmul.f32 %v53, %v255
    %v257 = vrcp.pop %v230
    %v258 = vmul.f32 %v54, %v257
    %v259 = vrcp.pop %v231
    %v260 = vmul.f32 %v55, %v259
    %v261 = vrcp.pop %v232
    %v262 = vmul.f32 %v56, %v261
    %v263 = vrcp.pop %v233
    %v264 = vmul.f32 %v57, %v263
    %v265 = vrcp.pop %v234
    %v266 = vmul.f32 %v58, %v265
    %v267 = vld [vmem:[#allocation5] sm:$0xff]
    %v268 = vld [vmem:[#allocation5 + $0x8] sm:$0xff]
    %v269 = vld [vmem:[#allocation5 + $0x10] sm:$0xff]
    %v270 = vld [vmem:[#allocation5 + $0x18] sm:$0xff]
    %v271 = vld [vmem:[#allocation5 + $0x20] sm:$0xff]
    %v272 = vld [vmem:[#allocation5 + $0x28] sm:$0xff]
    %v273 = vld [vmem:[#allocation5 + $0x30] sm:$0xff]
    %v274 = vld [vmem:[#allocation5 + $0x38] sm:$0xff]
    %v275 = vld [vmem:[#allocation5 + $0x40] sm:$0xff]
    %v276 = vld [vmem:[#allocation5 + $0x48] sm:$0xff]
    %v277 = vld [vmem:[#allocation5 + $0x50] sm:$0xff]
    %v278 = vld [vmem:[#allocation5 + $0x58] sm:$0xff]
    %v279 = vld [vmem:[#allocation5 + $0x60] sm:$0xff]
    %v280 = vld [vmem:[#allocation5 + $0x68] sm:$0xff]
    %v281 = vld [vmem:[#allocation5 + $0x70] sm:$0xff]
    %v282 = vld [vmem:[#allocation5 + $0x78] sm:$0xff]
    %v283 = vld [vmem:[%s2] sm:$0x1]
    %v285 = vlaneseq
    %v286 = vshrl.u32 %v285, 7
    %v287 = vsub.s32 0, %v286
    %v288 = vrot.slane %v283, %v287
    %290 = vmatprep.subr.mxu0 0.0
    %291 = vmatpush1.msra.mxu0 %v282
    %292 = vmatprep.subr.mxu0 0.0
    %293 = vmatpush1.msra.mxu0 %v281
    %294 = vmatprep.subr.mxu0 0.0
    %295 = vmatpush1.msra.mxu0 %v280
    %296 = vmatprep.subr.mxu0 0.0
    %297 = vmatpush1.msra.mxu0 %v279
    %298 = vmatprep.subr.mxu0 0.0
    %299 = vmatpush1.msra.mxu0 %v278
    %300 = vmatprep.subr.mxu0 0.0
    %301 = vmatpush1.msra.mxu0 %v277
    %302 = vmatprep.subr.mxu0 0.0
    %303 = vmatpush1.msra.mxu0 %v276
    %304 = vmatprep.subr.mxu0 0.0
    %305 = vmatpush1.msra.mxu0 %v275
    %306 = vmatprep.subr.mxu0 0.0
    %307 = vmatpush1.msra.mxu0 %v274
    %308 = vmatprep.subr.mxu0 0.0
    %309 = vmatpush1.msra.mxu0 %v273
    %310 = vmatprep.subr.mxu0 0.0
    %311 = vmatpush1.msra.mxu0 %v272
    %312 = vmatprep.subr.mxu0 0.0
    %313 = vmatpush1.msra.mxu0 %v271
    %314 = vmatprep.subr.mxu0 0.0
    %315 = vmatpush1.msra.mxu0 %v270
    %316 = vmatprep.subr.mxu0 0.0
    %317 = vmatpush1.msra.mxu0 %v269
    %318 = vmatprep.subr.mxu0 0.0
    %319 = vmatpush1.msra.mxu0 %v268
    %320 = vmatprep.subr.mxu0 0.0
    %321 = vmatpush1.msra.mxu0 %v267
    %322 = vmatprep.subr.mxu0 0.0
    %323 = vmatpush2.msra.mxu0 0.0
    %324 = vmatprep.subr.mxu0 0.0
    %325 = vmatpush2.msra.mxu0 0.0
    %326 = vmatprep.subr.mxu0 0.0
    %327 = vmatpush2.msra.mxu0 0.0
    %328 = vmatprep.subr.mxu0 0.0
    %329 = vmatpush2.msra.mxu0 0.0
    %330 = vmatprep.subr.mxu0 0.0
    %331 = vmatpush2.msra.mxu0 0.0
    %332 = vmatprep.subr.mxu0 0.0
    %333 = vmatpush2.msra.mxu0 0.0
    %334 = vmatprep.subr.mxu0 0.0
    %335 = vmatpush2.msra.mxu0 0.0
    %336 = vmatprep.subr.mxu0 0.0
    %337 = vmatpush2.msra.mxu0 0.0
    %338 = vmatprep.subr.mxu0 0.0
    %339 = vmatpush2.msra.mxu0 0.0
    %340 = vmatprep.subr.mxu0 0.0
    %341 = vmatpush2.msra.mxu0 0.0
    %342 = vmatprep.subr.mxu0 0.0
    %343 = vmatpush2.msra.mxu0 0.0
    %344 = vmatprep.subr.mxu0 0.0
    %345 = vmatpush2.msra.mxu0 0.0
    %346 = vmatprep.subr.mxu0 0.0
    %347 = vmatpush2.msra.mxu0 0.0
    %348 = vmatprep.subr.mxu0 0.0
    %349 = vmatpush2.msra.mxu0 0.0
    %350 = vmatprep.subr.mxu0 0.0
    %351 = vmatpush2.msra.mxu0 0.0
    %352 = vmatprep.subr.mxu0 0.0
    %353 = vmatpush2.msra.mxu0 0.0
    %354 = vmatprep.mubr.f32.mxu0 0.0
    %355 = vmatmul.mubr.f32.gmra.mxu0 %v236
    %v356 = vpop.f32.mrf.mxu0
    %v357 = vadd.f32 %v288, %v356
    %v358 = vpop.f32.mrf.mxu0
    %359 = vmatprep.mubr.f32.mxu0 0.0
    %360 = vmatmul.mubr.f32.gmra.mxu0 %v238
    %v361 = vpop.f32.mrf.mxu0
    %v362 = vadd.f32 %v288, %v361
    %v363 = vpop.f32.mrf.mxu0
    %364 = vmatprep.mubr.f32.mxu0 0.0
    %365 = vmatmul.mubr.f32.gmra.mxu0 %v240
    %v366 = vpop.f32.mrf.mxu0
    %v367 = vadd.f32 %v288, %v366
    %v368 = vpop.f32.mrf.mxu0
    %369 = vmatprep.mubr.f32.mxu0 0.0
    %370 = vmatmul.mubr.f32.gmra.mxu0 %v242
    %v371 = vpop.f32.mrf.mxu0
    %v372 = vadd.f32 %v288, %v371
    %v373 = vpop.f32.mrf.mxu0
    %374 = vmatprep.mubr.f32.mxu0 0.0
    %375 = vmatmul.mubr.f32.gmra.mxu0 %v244
    %v376 = vpop.f32.mrf.mxu0
    %v377 = vadd.f32 %v288, %v376
    %v378 = vpop.f32.mrf.mxu0
    %379 = vmatprep.mubr.f32.mxu0 0.0
    %380 = vmatmul.mubr.f32.gmra.mxu0 %v246
    %v381 = vpop.f32.mrf.mxu0
    %v382 = vadd.f32 %v288, %v381
    %v383 = vpop.f32.mrf.mxu0
    %384 = vmatprep.mubr.f32.mxu0 0.0
    %385 = vmatmul.mubr.f32.gmra.mxu0 %v248
    %v386 = vpop.f32.mrf.mxu0
    %v387 = vadd.f32 %v288, %v386
    %v388 = vpop.f32.mrf.mxu0
    %389 = vmatprep.mubr.f32.mxu0 0.0
    %390 = vmatmul.mubr.f32.gmra.mxu0 %v250
    %v391 = vpop.f32.mrf.mxu0
    %v392 = vadd.f32 %v288, %v391
    %v393 = vpop.f32.mrf.mxu0
    %394 = vmatprep.mubr.f32.mxu0 0.0
    %395 = vmatmul.mubr.f32.gmra.mxu0 %v252
    %v396 = vpop.f32.mrf.mxu0
    %v397 = vadd.f32 %v288, %v396
    %v398 = vpop.f32.mrf.mxu0
    %399 = vmatprep.mubr.f32.mxu0 0.0
    %400 = vmatmul.mubr.f32.gmra.mxu0 %v254
    %v401 = vpop.f32.mrf.mxu0
    %v402 = vadd.f32 %v288, %v401
    %v403 = vpop.f32.mrf.mxu0
    %404 = vmatprep.mubr.f32.mxu0 0.0
    %405 = vmatmul.mubr.f32.gmra.mxu0 %v256
    %v406 = vpop.f32.mrf.mxu0
    %v407 = vadd.f32 %v288, %v406
    %v408 = vpop.f32.mrf.mxu0
    %409 = vmatprep.mubr.f32.mxu0 0.0
    %410 = vmatmul.mubr.f32.gmra.mxu0 %v258
    %v411 = vpop.f32.mrf.mxu0
    %v412 = vadd.f32 %v288, %v411
    %v413 = vpop.f32.mrf.mxu0
    %414 = vmatprep.mubr.f32.mxu0 0.0
    %415 = vmatmul.mubr.f32.gmra.mxu0 %v260
    %v416 = vpop.f32.mrf.mxu0
    %v417 = vadd.f32 %v288, %v416
    %v418 = vpop.f32.mrf.mxu0
    %419 = vmatprep.mubr.f32.mxu0 0.0
    %420 = vmatmul.mubr.f32.gmra.mxu0 %v262
    %v421 = vpop.f32.mrf.mxu0
    %v422 = vadd.f32 %v288, %v421
    %v423 = vpop.f32.mrf.mxu0
    %424 = vmatprep.mubr.f32.mxu0 0.0
    %425 = vmatmul.mubr.f32.gmra.mxu0 %v264
    %v426 = vpop.f32.mrf.mxu0
    %v427 = vadd.f32 %v288, %v426
    %v428 = vpop.f32.mrf.mxu0
    %429 = vmatprep.mubr.f32.mxu0 0.0
    %430 = vmatmul.mubr.f32.gmra.mxu0 %v266
    %v431 = vpop.f32.mrf.mxu0
    %v432 = vadd.f32 %v288, %v431
    %v433 = vpop.f32.mrf.mxu0
    %434 = vdwg.mxu0
    %v435 = vpack.c.bf16 %v362, %v357
    %v436 = vpack.c.bf16 %v372, %v367
    %v437 = vpack.c.bf16 %v382, %v377
    %v438 = vpack.c.bf16 %v392, %v387
    %v439 = vpack.c.bf16 %v402, %v397
    %v440 = vpack.c.bf16 %v412, %v407
    %v441 = vpack.c.bf16 %v422, %v417
    %v442 = vpack.c.bf16 %v432, %v427
    %v451 = vunpack.c.l.b16 %v435
    %v452 = vunpack.c.h.b16 %v435
    %v453 = vunpack.c.l.b16 %v436
    %v454 = vunpack.c.h.b16 %v436
    %v455 = vunpack.c.l.b16 %v437
    %v456 = vunpack.c.h.b16 %v437
    %v457 = vunpack.c.l.b16 %v438
    %v458 = vunpack.c.h.b16 %v438
    %v459 = vunpack.c.l.b16 %v439
    %v460 = vunpack.c.h.b16 %v439
    %v461 = vunpack.c.l.b16 %v440
    %v462 = vunpack.c.h.b16 %v440
    %v463 = vunpack.c.l.b16 %v441
    %v464 = vunpack.c.h.b16 %v441
    %v465 = vunpack.c.l.b16 %v442
    %v466 = vunpack.c.h.b16 %v442
    %v467 = vpack.c.b16 %v451, %v451
    %v468 = vpack.c.b16 %v452, %v452
    %v469 = vpack.c.b16 %v453, %v453
    %v470 = vpack.c.b16 %v454, %v454
    %v471 = vpack.c.b16 %v455, %v455
    %v472 = vpack.c.b16 %v456, %v456
    %v473 = vpack.c.b16 %v457, %v457
    %v474 = vpack.c.b16 %v458, %v458
    %v475 = vpack.c.b16 %v459, %v459
    %v476 = vpack.c.b16 %v460, %v460
    %v477 = vpack.c.b16 %v461, %v461
    %v478 = vpack.c.b16 %v462, %v462
    %v479 = vpack.c.b16 %v463, %v463
    %v480 = vpack.c.b16 %v464, %v464
    %v481 = vpack.c.b16 %v465, %v465
    %v482 = vpack.c.b16 %v466, %v466
    %499 = vst [vmem:[#allocation7] sm:$0xf] %v467
    %500 = vst [vmem:[#allocation7 + $0x4] sm:$0xf] %v468
    %501 = vst [vmem:[#allocation7 + $0x8] sm:$0xf] %v469
    %502 = vst [vmem:[#allocation7 + $0xc] sm:$0xf] %v470
    %503 = vst [vmem:[#allocation7 + $0x10] sm:$0xf] %v471
    %504 = vst [vmem:[#allocation7 + $0x14] sm:$0xf] %v472
    %505 = vst [vmem:[#allocation7 + $0x18] sm:$0xf] %v473
    %506 = vst [vmem:[#allocation7 + $0x1c] sm:$0xf] %v474
    %507 = vst [vmem:[#allocation7 + $0x20] sm:$0xf] %v475
    %508 = vst [vmem:[#allocation7 + $0x24] sm:$0xf] %v476
    %509 = vst [vmem:[#allocation7 + $0x28] sm:$0xf] %v477
    %510 = vst [vmem:[#allocation7 + $0x2c] sm:$0xf] %v478
    %511 = vst [vmem:[#allocation7 + $0x30] sm:$0xf] %v479
    %512 = vst [vmem:[#allocation7 + $0x34] sm:$0xf] %v480
    %513 = vst [vmem:[#allocation7 + $0x38] sm:$0xf] %v481
    %514 = vst [vmem:[#allocation7 + $0x3c] sm:$0xf] %v482
    // Predicated region
    $region22: #{tpu_custom_call.1} parent=1 // pred_check
      _
    $region23: #{tpu_custom_call.1} parent=1 // pred_check_branch
      %516 = sbr.rel (0) target = $region25
    $region24: #{tpu_custom_call.1} parent=1 // pred_region
      %s518 = ssub.s32 1024, 1024
      %519 = vsyncadd [#allocation4], %s518
      %s520 = sshll.u32 [#allocation7], 4
      %s521 = int_to_ptr.vmem [resolvable:$true] %s520
      %526 = dma.vmem_to_hbm [thread:$0]  %s521, 1024, %s3, [#allocation4], 64, 64, 4
    $region25: #{tpu_custom_call.1} parent=1 // pred_fallthru
      _
    // Predicated region
    $region26: #{tpu_custom_call.1} parent=1 // pred_check
      _
    $region27: #{tpu_custom_call.1} parent=1 // pred_check_branch
      %528 = sbr.rel (0) target = $region29
    $region28: #{tpu_custom_call.1} parent=1 // pred_region
      %529 = dma.done [#allocation4], 1024
    $region29: #{tpu_custom_call.1} parent=1 // pred_fallthru
      _
    %530 = vsyncpa [#allocation3], 1
    %531 = vsyncpa [#allocation6], 1
    %532 = vsyncpa [#allocation4], 1

</llo_original>
